<compile_context>
chip_gen: v7x
topology: tpu7x:2x2x1
jax: 0.10.0
libtpu: 0.0.40
codegen_flags: <defaults>
</compile_context>

<pallas_src>
import numpy as np

import jax
import jax.numpy as jnp
from jax.experimental import pallas as pl
from jax.experimental.pallas import tpu as pltpu


# ----------------------------------------------------------------------------
# Host-side construction of the sinusoidal table (mirrors PyTorch __init__,
# vectorized with numpy broadcasting; identical float64 -> float32 numerics).
# ----------------------------------------------------------------------------
def build_pe_table(d_model: int, max_seq_len: int) -> np.ndarray:
    pos = np.arange(max_seq_len, dtype=np.float64)[:, None]          # [S, 1]
    j = np.arange(d_model, dtype=np.float64)[None, :]                 # [1, D]
    angle = pos / np.power(10000.0, 2.0 * np.floor(j / 2.0) / d_model)
    pe = np.empty_like(angle)
    pe[:, 0::2] = np.sin(angle[:, 0::2])
    pe[:, 1::2] = np.cos(angle[:, 1::2])
    pad_row = np.zeros((1, d_model), dtype=np.float64)
    return np.concatenate([pad_row, pe], axis=0).astype(np.float32)   # [S+1, D]


# ----------------------------------------------------------------------------
# Pallas kernel: masked copy of a table tile into one batch row's output tile.
#   out[b, row0 + r, :] = table[row0 + r, :]  if  row0 + r < len[b]  else 0
# ----------------------------------------------------------------------------
def pe_kernel(len_ref, table_ref, out_ref):
    b = pl.program_id(0)                     # batch index
    lt = pl.program_id(1)                    # L-tile index
    tl, _ = out_ref.shape                    # (tl, d_model); batch dim squeezed
    len_b = len_ref[b]                       # scalar from SMEM (prefetched)
    row0 = lt * tl
    # 2D iota over the sublane axis only; mask is constant across the lane axis.
    t = jax.lax.broadcasted_iota(jnp.int32, (tl, 1), 0) + row0
    out_ref[...] = jnp.where(t < len_b, table_ref[...], jnp.float32(0.0))


# ----------------------------------------------------------------------------
# Wrapper
# ----------------------------------------------------------------------------
def positional_encoding(input_len, d_model: int, max_seq_len: int,
                        table=None, max_len=None):
    """JAX/Pallas equivalent of PositionalEncoding.forward(input_len)."""
    if table is None:
        table = jnp.asarray(build_pe_table(d_model, max_seq_len))

    # Lengths are needed concretely only for the (static) output length; the
    # kernel itself reads them from SMEM via scalar prefetch.
    lens_host = np.asarray(input_len).reshape(-1).astype(np.int32)     # [B]
    B = int(lens_host.shape[0])

    if max_len is None:
        # TODO(synk): under jit with traced lengths this host max() cannot
        # work; the caller must pass max_len (or accept max_seq_len) instead.
        max_len = int(lens_host.max()) if lens_host.size else 0
    if max_len == 0:
        return jnp.zeros((B, 0, d_model), jnp.float32)
    # Reference would index out of the table past max_seq_len; clamp instead.
    max_len = min(int(max_len), max_seq_len)

    # Pad L up to a multiple of 8 (dense sublane stores); tile long sequences
    # so each block stays a few hundred KiB (safe on v5e/v6e/v7x VMEM budgets).
    TL = 512
    if max_len <= TL:
        L_pad = -(-max_len // 8) * 8
        tl = L_pad
    else:
        L_pad = -(-max_len // TL) * TL
        tl = TL

    # Rows for positions 1..max_len; zero-pad to L_pad (padded rows are masked
    # off anyway, zeros keep the copy well-defined).
    used = table[1:max_len + 1]                                        # [max_len, D]
    if L_pad > max_len:
        used = jnp.concatenate(
            [used, jnp.zeros((L_pad - max_len, d_model), used.dtype)], axis=0)

    lens = jnp.asarray(lens_host)                                      # [B] int32

    out = pl.pallas_call(
        pe_kernel,
        grid_spec=pltpu.PrefetchScalarGridSpec(
            num_scalar_prefetch=1,
            grid=(B, L_pad // tl),
            in_specs=[
                # Table tile: same block for every batch step -> stays resident.
                pl.BlockSpec((tl, d_model), lambda b, l, lens: (l, 0)),
            ],
            # Batch dim squeezed out of the kernel view (lane-dense (tl, D) tile).
            out_specs=pl.BlockSpec((None, tl, d_model),
                                   lambda b, l, lens: (b, l, 0)),
        ),
        out_shape=jax.ShapeDtypeStruct((B, L_pad, d_model), jnp.float32),
        compiler_params=pltpu.CompilerParams(
            dimension_semantics=("parallel", "parallel")),
        cost_estimate=pl.CostEstimate(
            flops=B * L_pad * d_model,            # compares + selects
            transcendentals=0,
            bytes_accessed=(B * 4                  # lengths (SMEM)
                            + L_pad * d_model * 4  # table tiles
                            + B * L_pad * d_model * 4)),  # output
    )(lens, used)

    return out[:, :max_len, :]


# ----------------------------------------------------------------------------
# Pure-numpy reference mirroring the PyTorch forward exactly.
# ----------------------------------------------------------------------------
def reference(input_len, table):
    lens = np.asarray(input_len).reshape(-1).astype(np.int64)
    max_len = int(lens.max())
    input_pos = np.array(
        [list(range(1, int(l) + 1)) + [0] * (max_len - int(l)) for l in lens],
        dtype=np.int64)
    return np.asarray(table)[input_pos]              # [B, max_len, d_model]


if __name__ == "__main__":
    D_MODEL = 128       # feature dim on the 128-lane axis (lane-dense stores)
    MAX_SEQ_LEN = 16
    BATCH = 4

    key = jax.random.PRNGKey(0)
    input_len = jax.random.randint(
        key, (BATCH, 1), minval=1, maxval=MAX_SEQ_LEN + 1, dtype=jnp.int32)

    table_np = build_pe_table(D_MODEL, MAX_SEQ_LEN)
    out = jax.block_until_ready(
        positional_encoding(input_len, D_MODEL, MAX_SEQ_LEN,
                            table=jnp.asarray(table_np)))

    ref = reference(input_len, table_np)
    assert out.shape == ref.shape, (out.shape, ref.shape)
    np.testing.assert_allclose(np.asarray(out), ref, rtol=1e-6, atol=0.0)
    print("KERNEL_OK")
</pallas_src>

<mosaic_0001>
module attributes {stable_mosaic.version = 11 : i64} {
  func.func @pe_kernel(%arg0: i32, %arg1: i32, %arg2: memref<4xi32, #tpu.memory_space<smem>>, %arg3: memref<16x128xf32, #tpu.memory_space<vmem>>, %arg4: memref<1x16x128xf32, #tpu.memory_space<vmem>>) attributes {dimension_semantics = [#tpu.dimension_semantics<parallel>, #tpu.dimension_semantics<parallel>], iteration_bounds = array<i64: 4, 1>, scalar_prefetch = 1 : i64, scratch_operands = 0 : i64, tpu.core_type = #tpu.core_type<tc>, window_params = [{transform_indices = @transform_0, window_bounds = array<i64: 16, 128>}, {transform_indices = @transform_1, window_bounds = array<i64: 1, 16, 128>}]} {
    %0 = arith.index_cast %arg0 : i32 to index
    %1 = memref.load %arg2[%0] : memref<4xi32, #tpu.memory_space<smem>>
    %c16_i32 = arith.constant 16 : i32
    %2 = arith.muli %arg1, %c16_i32 : i32
    %3 = tpu.iota {dimensions = array<i32: 0>} : vector<16x1xi32>
    %4 = vector.broadcast %2 : i32 to vector<16x1xi32>
    %5 = arith.addi %3, %4 : vector<16x1xi32>
    %6 = vector.broadcast %1 : i32 to vector<16x1xi32>
    %7 = arith.cmpi slt, %5, %6 : vector<16x1xi32>
    %c0 = arith.constant 0 : index
    %c0_0 = arith.constant 0 : index
    %8 = vector.load %arg3[%c0, %c0_0] : memref<16x128xf32, #tpu.memory_space<vmem>>, vector<16x128xf32>
    %cst = arith.constant 0.000000e+00 : f32
    %9 = vector.shape_cast %7 : vector<16x1xi1> to vector<16x1xi1>
    %10 = vector.broadcast %9 : vector<16x1xi1> to vector<16x128xi1>
    %11 = vector.broadcast %cst : f32 to vector<16x128xf32>
    %12 = arith.select %10, %8, %11 : vector<16x128xi1>, vector<16x128xf32>
    %c0_1 = arith.constant 0 : index
    %c0_2 = arith.constant 0 : index
    %c0_3 = arith.constant 0 : index
    %13 = vector.load %arg4[%c0_1, %c0_2, %c0_3] : memref<1x16x128xf32, #tpu.memory_space<vmem>>, vector<1x16x128xf32>
    %14 = vector.shape_cast %13 : vector<1x16x128xf32> to vector<16x128xf32>
    %15 = vector.shape_cast %12 : vector<16x128xf32> to vector<1x16x128xf32>
    tpu.vector_store %arg4[%c0_1, %c0_2, %c0_3], %15 {strides = array<i32>} : memref<1x16x128xf32, #tpu.memory_space<vmem>>, vector<1x16x128xf32>,
    return
  }
  func.func @transform_0(%arg0: i32, %arg1: i32, %arg2: memref<4xi32, #tpu.memory_space<smem>>) -> (i32, i32) {
    %c0_i32 = arith.constant 0 : i32
    %c0_i32_0 = arith.constant 0 : i32
    return %arg1, %c0_i32 : i32, i32
  }
  func.func @transform_1(%arg0: i32, %arg1: i32, %arg2: memref<4xi32, #tpu.memory_space<smem>>) -> (i32, i32, i32) {
    %c0_i32 = arith.constant 0 : i32
    %c0_i32_0 = arith.constant 0 : i32
    return %arg0, %arg1, %c0_i32 : i32, i32, i32
  }
}

</mosaic_0001>

<llo_original>
// kernel: tpu_custom_call.1
$region0: #{tpu_custom_call.1}
  #allocation0 [shape = 'u32[]', space=smem, size = 0x4, offset = 0x4, fixed_abs, tag = 'smem constant byte address 0x4 - core index']
  #allocation1 [shape = 'u32[144,128]{1,0:T(1,128)}', space=vmem, size = 0x12000, scoped, tag = 'internal scratch']
  #allocation2 [shape = 's32[1]{0}', space=sflag, size = 0x4, scoped, tag = 'scoped memory for tpu_custom_call.1']
  #allocation3 [shape = 'u8[512]{0}', space=smem, size = 0x200, scoped, tag = 'prefetched SMEM operand 0']
  %s0 = inlined_call_operand.hbm [shape: s32[4], index: 0, kind: input, shape index: {}]
  %s1 = inlined_call_operand.hbm [shape: f32[16,128], index: 1, kind: input, shape index: {}]
  %s2 = inlined_call_operand.hbm [shape: f32[4,16,128], index: 2, kind: output, shape index: {}]
  %s3 = sld [smem:[#allocation0]]
  $region41: #{tpu_custom_call.1} parent=0
    _
  %s5 = ssub.s32 1, %s3
  %s6 = scalar_select 0, %s5, %s3
  %8 = dma.hbm_to_smem %s0, 16, [#allocation3], [#allocation2]
  %9 = dma.done [#allocation2], 16
  %10 = sfence
  $region1: #{tpu_custom_call.1} parent=0
    #allocation4 [shape = 'u8[8192]{0}', space=vmem, size = 0x2000, scoped, tag = 'input window, operand 1, single buffered']
    #allocation5 [shape = 's32[2]{0}', space=sflag, size = 0x8, scoped, tag = 'scoped memory for tpu_custom_call.1']
    #allocation6 [shape = 's32[2]{0}', space=sflag, size = 0x8, scoped, tag = 'scoped memory for tpu_custom_call.1']
    #allocation7 [shape = 'u8[16384]{0}', space=vmem, size = 0x4000, scoped, tag = 'output window, operand 0']
    %11 = vsyncpa [#allocation5], 0
    %12 = vsyncpa [#allocation6], 0
    %s13 = scalar_lea.sflag [#allocation6], 1
    %14 = vsyncpa %s13, 0
    loop: start=0, step=1, limit=6
    $region2: #{tpu_custom_call.1} parent=1 // loop_pre_header
      _
    $region3: #{tpu_custom_call.1} parent=1 // loop_header
      %s16 = sphi 0, %s20
      %p17 = scmp.ge.s32.totalorder %s16, 6
      %s23 = sphi 0, %s35
      %s24 = sphi 0, %s31
      %s25 = sphi 0, %s23
      %s26 = sphi 0, %s24
      %s27 = sphi 0, %s25
      %s28 = sphi 0, %s26
      %s38 = sphi 0, %s40
      %s41 = sphi 0, %s38
      %s42 = sphi 0, %s41
      %s58 = sphi 0, %s42
      %s66 = sphi 0, %s68
      %s69 = sphi 0, %s66
      %s70 = sphi 0, %s69
      %s86 = sphi 0, %s70
    $region4: #{tpu_custom_call.1} parent=1 // loop_header_branch
      %19 = sbr.rel (%p17) target = $region8
    $region5: #{tpu_custom_call.1} parent=1 // loop_body
      %s21 = ssub.s32 %s16, 1
      %s22 = ssub.s32 %s16, 2
      %s29 = sadd.s32 1, %s24
      %p30 = scmp.ge.s32.totalorder %s29, 1
      %s31 = scalar_select %p30, 0, %s29
      %s32 = sadd.s32 1, %s23
      %s33 = scalar_select %p30, %s32, %s23
      %p34 = scmp.ge.s32.totalorder %s33, 4
      %s35 = scalar_select %p34, 0, %s33
      %s36 = ssub.s32 %s24, %s31
      %p37 = scmp.eq.s32.totalorder %s36, 0
      %s39 = sadd.s32 %s38, 1
      %s40 = scalar_select %p37, %s38, %s39
      %p43 = pneg %p37
      %p44 = scmp.eq.s32.totalorder %s16, 3
      %p45 = por %p43, %p44
      %p46 = scmp.ne.s32.totalorder %s38, %s41
      %p47 = scmp.eq.s32.totalorder %s16, 0
      %p48 = por %p46, %p47
      %p49 = scmp.ne.s32.totalorder %s38, %s41
      %p50 = scmp.eq.s32.totalorder %s21, 3
      %p51 = por %p49, %p50
      %p52 = scmp.ne.s32.totalorder %s41, %s42
      %p53 = scmp.eq.s32.totalorder %s21, 0
      %p54 = por %p52, %p53
      %p55 = scmp.ne.s32.totalorder %s41, %s42
      %p56 = scmp.eq.s32.totalorder %s22, 3
      %p57 = por %p55, %p56
      %p59 = scmp.ne.s32.totalorder %s42, %s58
      %p60 = scmp.eq.s32.totalorder %s22, 0
      %p61 = por %p59, %p60
      %s62 = ssub.s32 %s23, %s35
      %s63 = ssub.s32 %s24, %s31
      %s64 = sor.u32 %s62, %s63
      %p65 = scmp.eq.s32.totalorder %s64, 0
      %s67 = sadd.s32 %s66, 1
      %s68 = scalar_select %p65, %s66, %s67
      %p71 = pneg %p65
      %p72 = scmp.eq.s32.totalorder %s16, 3
      %p73 = por %p71, %p72
      %p74 = scmp.ne.s32.totalorder %s66, %s69
      %p75 = scmp.eq.s32.totalorder %s16, 0
      %p76 = por %p74, %p75
      %p77 = scmp.ne.s32.totalorder %s66, %s69
      %p78 = scmp.eq.s32.totalorder %s21, 3
      %p79 = por %p77, %p78
      %p80 = scmp.ne.s32.totalorder %s69, %s70
      %p81 = scmp.eq.s32.totalorder %s21, 0
      %p82 = por %p80, %p81
      %p83 = scmp.ne.s32.totalorder %s69, %s70
      %p84 = scmp.eq.s32.totalorder %s22, 3
      %p85 = por %p83, %p84
      %p87 = scmp.ne.s32.totalorder %s70, %s86
      %p88 = scmp.eq.s32.totalorder %s22, 0
      %p89 = por %p87, %p88
      %p90 = scmp.le.s32.totalorder 1, %s16
      %p91 = scmp.lt.s32.totalorder %s16, 5
      %p92 = pnand %p90, %p91
      %p93 = pneg %p92
      // Predicated region
      $region9: #{tpu_custom_call.1} parent=5 // pred_check
        _
      $region10: #{tpu_custom_call.1} parent=5 // pred_check_branch
        %95 = sbr.rel (%p92) target = $region12
      $region11: #{tpu_custom_call.1} parent=5 // pred_region
        %s96 = ssub.s32 %s16, 1
        // Predicated region
        $region13: #{tpu_custom_call.1} parent=11 // pred_check
          %p97 = pneg %p54
        $region14: #{tpu_custom_call.1} parent=11 // pred_check_branch
          %99 = sbr.rel (%p97) target = $region16
        $region15: #{tpu_custom_call.1} parent=11 // pred_region
          %s100 = smul.u32 2, %s26
          %s102 = ssub.s32 256, 256
          %103 = vsyncadd [#allocation5], %s102
          %s104 = smul.addr %s100, 128
          %s105 = scalar_lea.hbm %s1, %s104
          %s106 = sshll.u32 [#allocation4], 4
          %s107 = int_to_ptr.vmem [resolvable:$true] %s106
          %112 = dma.hbm_to_vmem [thread:$0]  %s105, 256, %s107, [#allocation5], 128, 128, 8
        $region16: #{tpu_custom_call.1} parent=11 // pred_fallthru
          _
      $region12: #{tpu_custom_call.1} parent=5 // pred_fallthru
        _
      %p113 = scmp.lt.s32.totalorder %s16, 4
      // Predicated region
      $region17: #{tpu_custom_call.1} parent=5 // pred_check
        %p114 = pneg %p113
      $region18: #{tpu_custom_call.1} parent=5 // pred_check_branch
        %116 = sbr.rel (%p114) target = $region20
      $region19: #{tpu_custom_call.1} parent=5 // pred_region
        _
      $region20: #{tpu_custom_call.1} parent=5 // pred_fallthru
        _
      %p117 = scmp.le.s32.totalorder 1, %s16
      %p118 = scmp.lt.s32.totalorder %s16, 5
      %p119 = pnand %p117, %p118
      %p120 = pneg %p119
      // Predicated region
      $region21: #{tpu_custom_call.1} parent=5 // pred_check
        _
      $region22: #{tpu_custom_call.1} parent=5 // pred_check_branch
        %122 = sbr.rel (%p119) target = $region24
      $region23: #{tpu_custom_call.1} parent=5 // pred_region
        %s123 = ssub.s32 %s16, 1
        // Predicated region
        $region25: #{tpu_custom_call.1} parent=23 // pred_check
          %p124 = pneg %p54
        $region26: #{tpu_custom_call.1} parent=23 // pred_check_branch
          %126 = sbr.rel (%p124) target = $region28
        $region27: #{tpu_custom_call.1} parent=23 // pred_region
          %127 = dma.done [#allocation5], 256
        $region28: #{tpu_custom_call.1} parent=23 // pred_fallthru
          _
        %p128 = pneg %p54
        %p129 = pneg %p51
        %p130 = pneg %p82
        %p131 = pneg %p79
        %s132 = sand.u32 %s69, 1
        %s133 = scalar_lea.sflag [#allocation6], %s132
        %s134 = sand.u32 %s69, 1
        %s135 = smul.addr %s134, 16
        %s136 = scalar_lea.vmem [#allocation7], %s135
        %s137 = smul.u32 2, %s26
        %s138 = smul.u32 2, %s26
        %s139 = sld [smem:[#allocation3 + %s25]]
        %s140 = smul.u32 %s26, 16
        %v141 = vlaneseq
        %v142 = vshrl.u32 %v141, 7
        %v143 = vadd.s32 %v142, 8
        %v144 = vstv %s140
        %v145 = vadd.s32 %v142, %v144
        %v146 = vadd.s32 %v143, %v144
        %v147 = vstv %s139
        %vm148 = vcmp.lt.s32.totalorder %v145, %v147
        %vm149 = vcmp.lt.s32.totalorder %v146, %v147
        %v150 = vld [vmem:[#allocation4] sm:$0xff]
        %v151 = vld [vmem:[#allocation4 + $0x8] sm:$0xff]
        %v152 = vsel %vm148, 1, 0
        %v153 = vsel %vm149, 1, 0
        %vm154 = vcmp.eq.s32.totalorder %v152, 1
        %vm155 = vcmp.eq.s32.totalorder %v153, 1
        %v156 = vsel %vm154, %v150, 0.0
        %v157 = vsel %vm155, %v151, 0.0
        %158 = vst [vmem:[%s136] sm:$0xff] %v156
        %159 = vst [vmem:[%s136 + $0x8] sm:$0xff] %v157
        %s160 = sand.u32 %s69, 1
        %s161 = scalar_lea.sflag [#allocation6], %s160
        %s162 = sand.u32 %s69, 1
        %s163 = smul.addr %s162, 16
        %s164 = scalar_lea.vmem [#allocation7], %s163
        // Predicated region
        $region29: #{tpu_custom_call.1} parent=23 // pred_check
          %p165 = pneg %p79
        $region30: #{tpu_custom_call.1} parent=23 // pred_check_branch
          %167 = sbr.rel (%p165) target = $region32
        $region31: #{tpu_custom_call.1} parent=23 // pred_region
          %s168 = smul.u32 2, %s26
          %s170 = ssub.s32 256, 256
          %171 = vsyncadd %s161, %s170
          %s172 = smul.addr %s25, 2
          %s173 = sadd.s32 %s168, %s172
          %s174 = smul.addr %s173, 128
          %s175 = scalar_lea.hbm %s2, %s174
          %s176 = sshll.u32 %s164, 4
          %s177 = int_to_ptr.vmem [resolvable:$true] %s176
          %182 = dma.vmem_to_hbm [thread:$0]  %s177, 256, %s175, %s161, 128, 128, 8
        $region32: #{tpu_custom_call.1} parent=23 // pred_fallthru
          _
      $region24: #{tpu_custom_call.1} parent=5 // pred_fallthru
        _
      %p183 = scmp.le.s32.totalorder 2, %s16
      // Predicated region
      $region33: #{tpu_custom_call.1} parent=5 // pred_check
        %p184 = pneg %p183
      $region34: #{tpu_custom_call.1} parent=5 // pred_check_branch
        %186 = sbr.rel (%p184) target = $region36
      $region35: #{tpu_custom_call.1} parent=5 // pred_region
        %s187 = ssub.s32 %s16, 2
        // Predicated region
        $region37: #{tpu_custom_call.1} parent=35 // pred_check
          %p188 = pneg %p85
        $region38: #{tpu_custom_call.1} parent=35 // pred_check_branch
          %190 = sbr.rel (%p188) target = $region40
        $region39: #{tpu_custom_call.1} parent=35 // pred_region
          %s191 = sand.u32 %s70, 1
          %s192 = scalar_lea.sflag [#allocation6], %s191
          %s193 = sand.u32 %s70, 1
          %s194 = smul.addr %s193, 16
          %s195 = scalar_lea.vmem [#allocation7], %s194
          %196 = dma.done %s192, 256
        $region40: #{tpu_custom_call.1} parent=35 // pred_fallthru
          _
      $region36: #{tpu_custom_call.1} parent=5 // pred_fallthru
        _
    $region6: #{tpu_custom_call.1} parent=1 // loop_footer
      %s20 = sadd.s32 1, %s16
    $region7: #{tpu_custom_call.1} parent=1 // loop_footer_branch
      %15 = sbr.rel target = $region3
    $region8: #{tpu_custom_call.1} parent=1 // loop_exit
      _
    %197 = vsyncpa [#allocation5], 1
    %s198 = scalar_lea.sflag [#allocation5], 1
    %199 = vsyncpa %s198, 1
    %200 = vsyncpa [#allocation6], 1
    %s201 = scalar_lea.sflag [#allocation6], 1
    %202 = vsyncpa %s201, 1

</llo_original>
